<compile_context>
chip_gen: v7x
topology: tpu7x:2x2x1
jax: 0.10.0
libtpu: 0.0.40
codegen_flags: <defaults>
</compile_context>

<pallas_src>
import functools

import jax
import jax.numpy as jnp
import numpy as np
from jax import lax
from jax.experimental import pallas as pl
from jax.experimental.pallas import tpu as pltpu


def _dot_nt(a, b):
    """(m, D) x (n, D) -> (m, n); contraction over the last (lane) dim of both
    operands: native MXU layout, no explicit transpose, f32 accumulation."""
    return lax.dot_general(
        a, b, dimension_numbers=(((1,), (1,)), ((), ())),
        preferred_element_type=jnp.float32)


def _contrastive_loss_kernel(temp_ref, img_ref, txt_ref, out_ref,
                             acc_m, acc_se, acc_ms, acc_ses, picked, lse_s,
                             cbest, cpick, sums, *, tn):
    """Grid = (2, num_tiles).  phase = program_id(0), tile index = program_id(1).

    temp_ref : (1, 1) f32 in SMEM, holds 1/temperature.
    img_ref, txt_ref : (N, D) embeddings, VMEM-resident (constant block index).
    out_ref  : (1, 1) f32 scalar loss in SMEM.
    Scratch:
      acc_m/acc_se   (N,1) online logsumexp of logits rows (texts direction)
      acc_ms/acc_ses (N,1) online logsumexp of target-similarity rows
      picked         (N,1) logits value at the running row-argmax of targets
      lse_s          (N,1) final row logsumexp of `s` (written end of phase 0)
      cbest/cpick    (1,N) running column max of log-targets / picked logit
      sums           (2,)  SMEM: [sum(texts_loss), sum(column LSE of logits)]
    """
    phase = pl.program_id(0)
    k = pl.program_id(1)
    kt = pl.num_programs(1)

    n = img_ref.shape[0]
    inv_temp = temp_ref[0, 0]

    start = pl.multiple_of(k * tn, tn)
    img = img_ref[...]                      # (N, D) resident
    txt = txt_ref[...]                      # (N, D) resident
    img_t = img_ref[pl.ds(start, tn), :]    # (tn, D) tile
    txt_t = txt_ref[pl.ds(start, tn), :]    # (tn, D) tile

    # ------------------------------------------------------------------ phase 0
    @pl.when(phase == 0)
    def _rows_phase():
        # logits[:, cols-in-tile] and s[:, cols-in-tile]
        logits_t = _dot_nt(txt, img_t) * inv_temp                       # (N, tn)
        s_t = (_dot_nt(img, img_t) + _dot_nt(txt, txt_t)) * (0.5 * inv_temp)

        @pl.when(k == 0)
        def _init():
            acc_m[...] = jnp.full_like(acc_m, -jnp.inf)
            acc_se[...] = jnp.zeros_like(acc_se)
            acc_ms[...] = jnp.full_like(acc_ms, -jnp.inf)
            acc_ses[...] = jnp.zeros_like(acc_ses)
            picked[...] = jnp.zeros_like(picked)
            sums[1] = jnp.float32(0.0)

        # Online logsumexp over rows of logits (texts direction).
        t_lmax = jnp.max(logits_t, axis=1, keepdims=True)               # (N, 1)
        new_m = jnp.maximum(acc_m[...], t_lmax)
        acc_se[...] = acc_se[...] * jnp.exp(acc_m[...] - new_m) + jnp.sum(
            jnp.exp(logits_t - new_m), axis=1, keepdims=True)
        acc_m[...] = new_m

        # Per-tile (complete over rows) logsumexp of logits columns ->
        # accumulate only the scalar sum needed for the final mean.
        c_max = jnp.max(logits_t, axis=0, keepdims=True)                # (1, tn)
        c_lse = c_max + jnp.log(
            jnp.sum(jnp.exp(logits_t - c_max), axis=0, keepdims=True))
        sums[1] = sums[1] + jnp.sum(c_lse)

        # Online row argmax of targets (== row argmax of s, first occurrence)
        # with the picked logit tracked alongside, plus online LSE of s rows.
        t_smax = jnp.max(s_t, axis=1, keepdims=True)                    # (N, 1)
        col_iota = lax.broadcasted_iota(jnp.int32, s_t.shape, 1)
        local_cand = jnp.min(jnp.where(s_t == t_smax, col_iota, tn),
                             axis=1, keepdims=True)                     # (N, 1)
        t_pick = jnp.sum(jnp.where(col_iota == local_cand, logits_t, 0.0),
                         axis=1, keepdims=True)                         # (N, 1)
        upd = t_smax > acc_ms[...]            # strict > keeps first occurrence
        picked[...] = jnp.where(upd, t_pick, picked[...])
        new_ms = jnp.maximum(acc_ms[...], t_smax)
        acc_ses[...] = acc_ses[...] * jnp.exp(acc_ms[...] - new_ms) + jnp.sum(
            jnp.exp(s_t - new_ms), axis=1, keepdims=True)
        acc_ms[...] = new_ms

        @pl.when(k == kt - 1)
        def _finalize_rows():
            texts_lse = acc_m[...] + jnp.log(acc_se[...])               # (N, 1)
            sums[0] = jnp.sum(texts_lse - picked[...])                  # sum texts_loss
            lse_s[...] = acc_ms[...] + jnp.log(acc_ses[...])            # row LSE of s

    # ------------------------------------------------------------------ phase 1
    @pl.when(phase == 1)
    def _cols_phase():
        # logits[rows-in-tile, :] and s[rows-in-tile, :]
        logits_t = _dot_nt(txt_t, img) * inv_temp                       # (tn, N)
        s_t = (_dot_nt(img_t, img) + _dot_nt(txt_t, txt)) * (0.5 * inv_temp)
        # log-target values for these rows: s[i, :] - row_lse_s[i]
        v_t = s_t - lse_s[pl.ds(start, tn), :]                          # (tn, N)

        @pl.when(k == 0)
        def _init():
            cbest[...] = jnp.full_like(cbest, -jnp.inf)
            cpick[...] = jnp.zeros_like(cpick)

        # Online column argmax of log-targets (first occurrence over rows),
        # tracking the picked logit logits[argmax_i, j].
        t_vmax = jnp.max(v_t, axis=0, keepdims=True)                    # (1, N)
        row_iota = lax.broadcasted_iota(jnp.int32, v_t.shape, 0)
        local_cand = jnp.min(jnp.where(v_t == t_vmax, row_iota, tn),
                             axis=0, keepdims=True)                     # (1, N)
        t_pick = jnp.sum(jnp.where(row_iota == local_cand, logits_t, 0.0),
                         axis=0, keepdims=True)                         # (1, N)
        upd = t_vmax > cbest[...]
        cpick[...] = jnp.where(upd, t_pick, cpick[...])
        cbest[...] = jnp.maximum(cbest[...], t_vmax)

        @pl.when(k == kt - 1)
        def _finalize_cols():
            images_sum = sums[1] - jnp.sum(cpick[...])                  # sum images_loss
            out_ref[0, 0] = (sums[0] + images_sum) / (2.0 * n)


def _pick_tile(n):
    """Largest divisor of n that is <= 256, preferring multiples of the f32
    sublane tile (8); falls back to any divisor / a single tile."""
    lim = min(n, 256)
    for t in range(lim, 0, -1):
        if n % t == 0 and t % 8 == 0:
            return t
    for t in range(lim, 0, -1):
        if n % t == 0:
            return t
    return n


def contrastive_loss(image_embeddings, text_embeddings, temperature):
    """Pallas wrapper. image_embeddings, text_embeddings: (N, D)."""
    assert image_embeddings.shape == text_embeddings.shape
    n, d = image_embeddings.shape
    tn = _pick_tile(n)
    kt = n // tn

    inv_temp = jnp.full((1, 1), 1.0 / temperature, dtype=jnp.float32)
    kernel = functools.partial(_contrastive_loss_kernel, tn=tn)

    out = pl.pallas_call(
        kernel,
        out_shape=jax.ShapeDtypeStruct((1, 1), jnp.float32),
        grid=(2, kt),
        in_specs=[
            pl.BlockSpec(memory_space=pltpu.SMEM),          # 1/temperature
            pl.BlockSpec((n, d), lambda p, k: (0, 0)),      # image embeddings (resident)
            pl.BlockSpec((n, d), lambda p, k: (0, 0)),      # text embeddings  (resident)
        ],
        out_specs=pl.BlockSpec(memory_space=pltpu.SMEM),    # scalar loss
        scratch_shapes=[
            pltpu.VMEM((n, 1), jnp.float32),   # acc_m   (logits row max)
            pltpu.VMEM((n, 1), jnp.float32),   # acc_se  (logits row sumexp)
            pltpu.VMEM((n, 1), jnp.float32),   # acc_ms  (s row max)
            pltpu.VMEM((n, 1), jnp.float32),   # acc_ses (s row sumexp)
            pltpu.VMEM((n, 1), jnp.float32),   # picked  (texts picked logit)
            pltpu.VMEM((n, 1), jnp.float32),   # lse_s   (row LSE of s)
            pltpu.VMEM((1, n), jnp.float32),   # cbest   (col max of log-targets)
            pltpu.VMEM((1, n), jnp.float32),   # cpick   (images picked logit)
            pltpu.SMEM((2,), jnp.float32),     # sums    [texts_sum, col_lse_sum]
        ],
        compiler_params=pltpu.CompilerParams(
            dimension_semantics=("arbitrary", "arbitrary"),
            vmem_limit_bytes=32 * 1024 * 1024,
        ),
    )(inv_temp, image_embeddings, text_embeddings)
    return out[0, 0]


def _reference_loss(image_embeddings, text_embeddings, temperature):
    """Pure-JAX reference mirroring the PyTorch module exactly."""
    logits = text_embeddings @ image_embeddings.T / temperature
    images_similarity = image_embeddings @ image_embeddings.T
    texts_similarity = text_embeddings @ text_embeddings.T
    targets = jax.nn.softmax(
        (images_similarity + texts_similarity) / (2.0 * temperature), axis=-1
    )

    def ce(lg, idx):
        lse = jax.scipy.special.logsumexp(lg, axis=-1)
        picked = jnp.take_along_axis(lg, idx[:, None], axis=-1)[:, 0]
        return lse - picked

    texts_loss = ce(logits, jnp.argmax(targets, axis=1))
    images_loss = ce(logits.T, jnp.argmax(targets, axis=0))
    return jnp.mean((images_loss + texts_loss) / 2.0)


if __name__ == "__main__":
    # Small deterministic example: batch=8, embedding dim=32.
    key = jax.random.PRNGKey(0)
    k_img, k_txt = jax.random.split(key)
    N, D = 8, 32
    temperature = 0.07

    image_embeddings = jax.random.normal(k_img, (N, D), dtype=jnp.float32)
    text_embeddings = jax.random.normal(k_txt, (N, D), dtype=jnp.float32)

    loss = contrastive_loss(image_embeddings, text_embeddings, temperature)
    loss = jax.block_until_ready(loss)

    ref = jax.block_until_ready(
        _reference_loss(image_embeddings, text_embeddings, temperature)
    )
    assert np.allclose(np.asarray(loss), np.asarray(ref), rtol=1e-5, atol=1e-5), (
        loss,
        ref,
    )
    print("KERNEL_OK")
</pallas_src>

<mosaic_0001>
module attributes {stable_mosaic.version = 11 : i64} {
  func.func @_contrastive_loss_kernel(%arg0: i32, %arg1: i32, %arg2: memref<1x1xf32, #tpu.memory_space<smem>>, %arg3: memref<8x32xf32, #tpu.memory_space<vmem>>, %arg4: memref<8x32xf32, #tpu.memory_space<vmem>>, %arg5: memref<1x1xf32, #tpu.memory_space<smem>>, %arg6: memref<8x1xf32, #tpu.memory_space<vmem>>, %arg7: memref<8x1xf32, #tpu.memory_space<vmem>>, %arg8: memref<8x1xf32, #tpu.memory_space<vmem>>, %arg9: memref<8x1xf32, #tpu.memory_space<vmem>>, %arg10: memref<8x1xf32, #tpu.memory_space<vmem>>, %arg11: memref<8x1xf32, #tpu.memory_space<vmem>>, %arg12: memref<1x8xf32, #tpu.memory_space<vmem>>, %arg13: memref<1x8xf32, #tpu.memory_space<vmem>>, %arg14: memref<2xf32, #tpu.memory_space<smem>>) attributes {dimension_semantics = [#tpu.dimension_semantics<arbitrary>, #tpu.dimension_semantics<arbitrary>], iteration_bounds = array<i64: 2, 1>, scalar_prefetch = 0 : i64, scratch_operands = 9 : i64, tpu.core_type = #tpu.core_type<tc>, window_params = [{transform_indices = @transform_0, window_bounds = array<i64: 1, 1>}, {pipeline_mode = #tpu.pipeline_mode<synchronous>, transform_indices = @transform_1, window_bounds = array<i64: 8, 32>}, {pipeline_mode = #tpu.pipeline_mode<synchronous>, transform_indices = @transform_2, window_bounds = array<i64: 8, 32>}, {transform_indices = @transform_3, window_bounds = array<i64: 1, 1>}]} {
    %c0 = arith.constant 0 : index
    %c0_0 = arith.constant 0 : index
    %0 = memref.load %arg2[%c0, %c0_0] : memref<1x1xf32, #tpu.memory_space<smem>>
    %c8_i32 = arith.constant 8 : i32
    %1 = arith.muli %arg1, %c8_i32 : i32
    %2 = tpu.assume_multiple %1, 8 : i32
    %c0_1 = arith.constant 0 : index
    %c0_2 = arith.constant 0 : index
    %3 = vector.load %arg3[%c0_1, %c0_2] : memref<8x32xf32, #tpu.memory_space<vmem>>, vector<8x32xf32>
    %c0_3 = arith.constant 0 : index
    %c0_4 = arith.constant 0 : index
    %4 = vector.load %arg4[%c0_3, %c0_4] : memref<8x32xf32, #tpu.memory_space<vmem>>, vector<8x32xf32>
    %5 = arith.index_cast %2 : i32 to index
    %c0_5 = arith.constant 0 : index
    %6 = vector.load %arg3[%5, %c0_5] : memref<8x32xf32, #tpu.memory_space<vmem>>, vector<8x32xf32>
    %7 = arith.index_cast %2 : i32 to index
    %c0_6 = arith.constant 0 : index
    %8 = vector.load %arg4[%7, %c0_6] : memref<8x32xf32, #tpu.memory_space<vmem>>, vector<8x32xf32>
    %c0_i32 = arith.constant 0 : i32
    %9 = arith.cmpi eq, %arg0, %c0_i32 : i32
    %10 = arith.extui %9 : i1 to i32
    %c0_i32_7 = arith.constant 0 : i32
    %11 = arith.cmpi ne, %10, %c0_i32_7 : i32
    scf.if %11 {
      %cst = arith.constant dense<0.000000e+00> : vector<8x8xf32>
      %15 = tpu.matmul %4, %6, %cst {dimension_numbers = #tpu.dot_dimension_numbers<[1], [1], [0], [0], [0, 0, 1, 0], [], []>} : vector<8x32xf32>, vector<8x32xf32>, vector<8x8xf32> -> vector<8x8xf32>
      %16 = vector.broadcast %0 : f32 to vector<8x8xf32>
      %17 = arith.mulf %15, %16 : vector<8x8xf32>
      %cst_9 = arith.constant dense<0.000000e+00> : vector<8x8xf32>
      %18 = tpu.matmul %3, %6, %cst_9 {dimension_numbers = #tpu.dot_dimension_numbers<[1], [1], [0], [0], [0, 0, 1, 0], [], []>} : vector<8x32xf32>, vector<8x32xf32>, vector<8x8xf32> -> vector<8x8xf32>
      %cst_10 = arith.constant dense<0.000000e+00> : vector<8x8xf32>
      %19 = tpu.matmul %4, %8, %cst_10 {dimension_numbers = #tpu.dot_dimension_numbers<[1], [1], [0], [0], [0, 0, 1, 0], [], []>} : vector<8x32xf32>, vector<8x32xf32>, vector<8x8xf32> -> vector<8x8xf32>
      %20 = arith.addf %18, %19 : vector<8x8xf32>
      %cst_11 = arith.constant 5.000000e-01 : f32
      %21 = arith.mulf %cst_11, %0 : f32
      %22 = vector.broadcast %21 : f32 to vector<8x8xf32>
      %23 = arith.mulf %20, %22 : vector<8x8xf32>
      %c0_i32_12 = arith.constant 0 : i32
      %24 = arith.cmpi eq, %arg1, %c0_i32_12 : i32
      %25 = arith.extui %24 : i1 to i32
      %c0_i32_13 = arith.constant 0 : i32
      %26 = arith.cmpi ne, %25, %c0_i32_13 : i32
      scf.if %26 {
        %cst_54 = arith.constant 0xFF800000 : f32
        %98 = vector.broadcast %cst_54 : f32 to vector<8x1xf32>
        %c0_55 = arith.constant 0 : index
        %c0_56 = arith.constant 0 : index
        %99 = vector.load %arg6[%c0_55, %c0_56] : memref<8x1xf32, #tpu.memory_space<vmem>>, vector<8x1xf32>
        tpu.vector_store %arg6[%c0_55, %c0_56], %98 {strides = array<i32>} : memref<8x1xf32, #tpu.memory_space<vmem>>, vector<8x1xf32>,
        %cst_57 = arith.constant 0.000000e+00 : f32
        %100 = vector.broadcast %cst_57 : f32 to vector<8x1xf32>
        %c0_58 = arith.constant 0 : index
        %c0_59 = arith.constant 0 : index
        %101 = vector.load %arg7[%c0_58, %c0_59] : memref<8x1xf32, #tpu.memory_space<vmem>>, vector<8x1xf32>
        tpu.vector_store %arg7[%c0_58, %c0_59], %100 {strides = array<i32>} : memref<8x1xf32, #tpu.memory_space<vmem>>, vector<8x1xf32>,
        %cst_60 = arith.constant 0xFF800000 : f32
        %102 = vector.broadcast %cst_60 : f32 to vector<8x1xf32>
        %c0_61 = arith.constant 0 : index
        %c0_62 = arith.constant 0 : index
        %103 = vector.load %arg8[%c0_61, %c0_62] : memref<8x1xf32, #tpu.memory_space<vmem>>, vector<8x1xf32>
        tpu.vector_store %arg8[%c0_61, %c0_62], %102 {strides = array<i32>} : memref<8x1xf32, #tpu.memory_space<vmem>>, vector<8x1xf32>,
        %cst_63 = arith.constant 0.000000e+00 : f32
        %104 = vector.broadcast %cst_63 : f32 to vector<8x1xf32>
        %c0_64 = arith.constant 0 : index
        %c0_65 = arith.constant 0 : index
        %105 = vector.load %arg9[%c0_64, %c0_65] : memref<8x1xf32, #tpu.memory_space<vmem>>, vector<8x1xf32>
        tpu.vector_store %arg9[%c0_64, %c0_65], %104 {strides = array<i32>} : memref<8x1xf32, #tpu.memory_space<vmem>>, vector<8x1xf32>,
        %cst_66 = arith.constant 0.000000e+00 : f32
        %106 = vector.broadcast %cst_66 : f32 to vector<8x1xf32>
        %c0_67 = arith.constant 0 : index
        %c0_68 = arith.constant 0 : index
        %107 = vector.load %arg10[%c0_67, %c0_68] : memref<8x1xf32, #tpu.memory_space<vmem>>, vector<8x1xf32>
        tpu.vector_store %arg10[%c0_67, %c0_68], %106 {strides = array<i32>} : memref<8x1xf32, #tpu.memory_space<vmem>>, vector<8x1xf32>,
        %cst_69 = arith.constant 0.000000e+00 : f32
        %c1_70 = arith.constant 1 : index
        %108 = memref.load %arg14[%c1_70] : memref<2xf32, #tpu.memory_space<smem>>
        memref.store %cst_69, %arg14[%c1_70] : memref<2xf32, #tpu.memory_space<smem>>
      } else {
      }
      %cst_14 = arith.constant dense<0xFF800000> : vector<8xf32>
      %27 = vector.multi_reduction <maximumf>, %17, %cst_14 [1] : vector<8x8xf32> to vector<8xf32>
      %28 = vector.shape_cast %27 : vector<8xf32> to vector<8x1xf32>
      %c0_15 = arith.constant 0 : index
      %c0_16 = arith.constant 0 : index
      %29 = vector.load %arg6[%c0_15, %c0_16] : memref<8x1xf32, #tpu.memory_space<vmem>>, vector<8x1xf32>
      %30 = arith.maximumf %29, %28 : vector<8x1xf32>
      %c0_17 = arith.constant 0 : index
      %c0_18 = arith.constant 0 : index
      %31 = vector.load %arg7[%c0_17, %c0_18] : memref<8x1xf32, #tpu.memory_space<vmem>>, vector<8x1xf32>
      %c0_19 = arith.constant 0 : index
      %c0_20 = arith.constant 0 : index
      %32 = vector.load %arg6[%c0_19, %c0_20] : memref<8x1xf32, #tpu.memory_space<vmem>>, vector<8x1xf32>
      %33 = arith.subf %32, %30 : vector<8x1xf32>
      %34 = math.exp %33 : vector<8x1xf32>
      %35 = arith.mulf %31, %34 : vector<8x1xf32>
      %36 = vector.broadcast %30 : vector<8x1xf32> to vector<8x8xf32>
      %37 = arith.subf %17, %36 : vector<8x8xf32>
      %38 = math.exp %37 : vector<8x8xf32>
      %cst_21 = arith.constant dense<0.000000e+00> : vector<8xf32>
      %39 = vector.multi_reduction <add>, %38, %cst_21 [1] : vector<8x8xf32> to vector<8xf32>
      %40 = vector.shape_cast %39 : vector<8xf32> to vector<8x1xf32>
      %41 = arith.addf %35, %40 : vector<8x1xf32>
      %c0_22 = arith.constant 0 : index
      %c0_23 = arith.constant 0 : index
      %42 = vector.load %arg7[%c0_22, %c0_23] : memref<8x1xf32, #tpu.memory_space<vmem>>, vector<8x1xf32>
      tpu.vector_store %arg7[%c0_22, %c0_23], %41 {strides = array<i32>} : memref<8x1xf32, #tpu.memory_space<vmem>>, vector<8x1xf32>,
      %c0_24 = arith.constant 0 : index
      %c0_25 = arith.constant 0 : index
      %43 = vector.load %arg6[%c0_24, %c0_25] : memref<8x1xf32, #tpu.memory_space<vmem>>, vector<8x1xf32>
      tpu.vector_store %arg6[%c0_24, %c0_25], %30 {strides = array<i32>} : memref<8x1xf32, #tpu.memory_space<vmem>>, vector<8x1xf32>,
      %cst_26 = arith.constant dense<0xFF800000> : vector<8xf32>
      %44 = vector.multi_reduction <maximumf>, %17, %cst_26 [0] : vector<8x8xf32> to vector<8xf32>
      %45 = vector.shape_cast %44 : vector<8xf32> to vector<1x8xf32>
      %46 = vector.broadcast %45 : vector<1x8xf32> to vector<8x8xf32>
      %47 = arith.subf %17, %46 : vector<8x8xf32>
      %48 = math.exp %47 : vector<8x8xf32>
      %cst_27 = arith.constant dense<0.000000e+00> : vector<8xf32>
      %49 = vector.multi_reduction <add>, %48, %cst_27 [0] : vector<8x8xf32> to vector<8xf32>
      %50 = vector.shape_cast %49 : vector<8xf32> to vector<1x8xf32>
      %51 = math.log %50 : vector<1x8xf32>
      %52 = arith.addf %45, %51 : vector<1x8xf32>
      %c1 = arith.constant 1 : index
      %53 = memref.load %arg14[%c1] : memref<2xf32, #tpu.memory_space<smem>>
      %54 = vector.shape_cast %52 : vector<1x8xf32> to vector<1x1x8xf32>
      %cst_28 = arith.constant dense<0.000000e+00> : vector<1xf32>
      %55 = vector.multi_reduction <add>, %54, %cst_28 [1, 2] : vector<1x1x8xf32> to vector<1xf32>
      %56 = vector.shape_cast %55 : vector<1xf32> to vector<1x1x1xf32>
      %57 = vector.extract %56[0, 0, 0] : f32 from vector<1x1x1xf32>
      %58 = arith.addf %53, %57 : f32
      %c1_29 = arith.constant 1 : index
      %59 = memref.load %arg14[%c1_29] : memref<2xf32, #tpu.memory_space<smem>>
      memref.store %58, %arg14[%c1_29] : memref<2xf32, #tpu.memory_space<smem>>
      %cst_30 = arith.constant dense<0xFF800000> : vector<8xf32>
      %60 = vector.multi_reduction <maximumf>, %23, %cst_30 [1] : vector<8x8xf32> to vector<8xf32>
      %61 = vector.shape_cast %60 : vector<8xf32> to vector<8x1xf32>
      %62 = tpu.iota {dimensions = array<i32: 1>} : vector<8x8xi32>
      %63 = vector.broadcast %61 : vector<8x1xf32> to vector<8x8xf32>
      %64 = arith.cmpf oeq, %23, %63 : vector<8x8xf32>
      %c8_i32_31 = arith.constant 8 : i32
      %65 = vector.broadcast %c8_i32_31 : i32 to vector<8x8xi32>
      %66 = arith.select %64, %62, %65 : vector<8x8xi1>, vector<8x8xi32>
      %cst_32 = arith.constant dense<2147483647> : vector<8xi32>
      %67 = vector.multi_reduction <minsi>, %66, %cst_32 [1] : vector<8x8xi32> to vector<8xi32>
      %68 = vector.shape_cast %67 : vector<8xi32> to vector<8x1xi32>
      %69 = vector.broadcast %68 : vector<8x1xi32> to vector<8x8xi32>
      %70 = arith.cmpi eq, %62, %69 : vector<8x8xi32>
      %cst_33 = arith.constant 0.000000e+00 : f32
      %71 = vector.broadcast %cst_33 : f32 to vector<8x8xf32>
      %72 = arith.select %70, %17, %71 : vector<8x8xi1>, vector<8x8xf32>
      %cst_34 = arith.constant dense<0.000000e+00> : vector<8xf32>
      %73 = vector.multi_reduction <add>, %72, %cst_34 [1] : vector<8x8xf32> to vector<8xf32>
      %74 = vector.shape_cast %73 : vector<8xf32> to vector<8x1xf32>
      %c0_35 = arith.constant 0 : index
      %c0_36 = arith.constant 0 : index
      %75 = vector.load %arg8[%c0_35, %c0_36] : memref<8x1xf32, #tpu.memory_space<vmem>>, vector<8x1xf32>
      %76 = arith.cmpf ogt, %61, %75 : vector<8x1xf32>
      %c0_37 = arith.constant 0 : index
      %c0_38 = arith.constant 0 : index
      %77 = vector.load %arg10[%c0_37, %c0_38] : memref<8x1xf32, #tpu.memory_space<vmem>>, vector<8x1xf32>
      %78 = arith.select %76, %74, %77 : vector<8x1xi1>, vector<8x1xf32>
      %c0_39 = arith.constant 0 : index
      %c0_40 = arith.constant 0 : index
      %79 = vector.load %arg10[%c0_39, %c0_40] : memref<8x1xf32, #tpu.memory_space<vmem>>, vector<8x1xf32>
      tpu.vector_store %arg10[%c0_39, %c0_40], %78 {strides = array<i32>} : memref<8x1xf32, #tpu.memory_space<vmem>>, vector<8x1xf32>,
      %c0_41 = arith.constant 0 : index
      %c0_42 = arith.constant 0 : index
      %80 = vector.load %arg8[%c0_41, %c0_42] : memref<8x1xf32, #tpu.memory_space<vmem>>, vector<8x1xf32>
      %81 = arith.maximumf %80, %61 : vector<8x1xf32>
      %c0_43 = arith.constant 0 : index
      %c0_44 = arith.constant 0 : index
      %82 = vector.load %arg9[%c0_43, %c0_44] : memref<8x1xf32, #tpu.memory_space<vmem>>, vector<8x1xf32>
      %c0_45 = arith.constant 0 : index
      %c0_46 = arith.constant 0 : index
      %83 = vector.load %arg8[%c0_45, %c0_46] : memref<8x1xf32, #tpu.memory_space<vmem>>, vector<8x1xf32>
      %84 = arith.subf %83, %81 : vector<8x1xf32>
      %85 = math.exp %84 : vector<8x1xf32>
      %86 = arith.mulf %82, %85 : vector<8x1xf32>
      %87 = vector.broadcast %81 : vector<8x1xf32> to vector<8x8xf32>
      %88 = arith.subf %23, %87 : vector<8x8xf32>
      %89 = math.exp %88 : vector<8x8xf32>
      %cst_47 = arith.constant dense<0.000000e+00> : vector<8xf32>
      %90 = vector.multi_reduction <add>, %89, %cst_47 [1] : vector<8x8xf32> to vector<8xf32>
      %91 = vector.shape_cast %90 : vector<8xf32> to vector<8x1xf32>
      %92 = arith.addf %86, %91 : vector<8x1xf32>
      %c0_48 = arith.constant 0 : index
      %c0_49 = arith.constant 0 : index
      %93 = vector.load %arg9[%c0_48, %c0_49] : memref<8x1xf32, #tpu.memory_space<vmem>>, vector<8x1xf32>
      tpu.vector_store %arg9[%c0_48, %c0_49], %92 {strides = array<i32>} : memref<8x1xf32, #tpu.memory_space<vmem>>, vector<8x1xf32>,
      %c0_50 = arith.constant 0 : index
      %c0_51 = arith.constant 0 : index
      %94 = vector.load %arg8[%c0_50, %c0_51] : memref<8x1xf32, #tpu.memory_space<vmem>>, vector<8x1xf32>
      tpu.vector_store %arg8[%c0_50, %c0_51], %81 {strides = array<i32>} : memref<8x1xf32, #tpu.memory_space<vmem>>, vector<8x1xf32>,
      %c0_i32_52 = arith.constant 0 : i32
      %95 = arith.cmpi eq, %arg1, %c0_i32_52 : i32
      %96 = arith.extui %95 : i1 to i32
      %c0_i32_53 = arith.constant 0 : i32
      %97 = arith.cmpi ne, %96, %c0_i32_53 : i32
      scf.if %97 {
        %c0_54 = arith.constant 0 : index
        %c0_55 = arith.constant 0 : index
        %98 = vector.load %arg6[%c0_54, %c0_55] : memref<8x1xf32, #tpu.memory_space<vmem>>, vector<8x1xf32>
        %c0_56 = arith.constant 0 : index
        %c0_57 = arith.constant 0 : index
        %99 = vector.load %arg7[%c0_56, %c0_57] : memref<8x1xf32, #tpu.memory_space<vmem>>, vector<8x1xf32>
        %100 = math.log %99 : vector<8x1xf32>
        %101 = arith.addf %98, %100 : vector<8x1xf32>
        %c0_58 = arith.constant 0 : index
        %c0_59 = arith.constant 0 : index
        %102 = vector.load %arg10[%c0_58, %c0_59] : memref<8x1xf32, #tpu.memory_space<vmem>>, vector<8x1xf32>
        %103 = arith.subf %101, %102 : vector<8x1xf32>
        %104 = vector.shape_cast %103 : vector<8x1xf32> to vector<1x8x1xf32>
        %cst_60 = arith.constant dense<0.000000e+00> : vector<1xf32>
        %105 = vector.multi_reduction <add>, %104, %cst_60 [1, 2] : vector<1x8x1xf32> to vector<1xf32>
        %106 = vector.shape_cast %105 : vector<1xf32> to vector<1x1x1xf32>
        %107 = vector.extract %106[0, 0, 0] : f32 from vector<1x1x1xf32>
        %c0_61 = arith.constant 0 : index
        %108 = memref.load %arg14[%c0_61] : memref<2xf32, #tpu.memory_space<smem>>
        memref.store %107, %arg14[%c0_61] : memref<2xf32, #tpu.memory_space<smem>>
        %c0_62 = arith.constant 0 : index
        %c0_63 = arith.constant 0 : index
        %109 = vector.load %arg8[%c0_62, %c0_63] : memref<8x1xf32, #tpu.memory_space<vmem>>, vector<8x1xf32>
        %c0_64 = arith.constant 0 : index
        %c0_65 = arith.constant 0 : index
        %110 = vector.load %arg9[%c0_64, %c0_65] : memref<8x1xf32, #tpu.memory_space<vmem>>, vector<8x1xf32>
        %111 = math.log %110 : vector<8x1xf32>
        %112 = arith.addf %109, %111 : vector<8x1xf32>
        %c0_66 = arith.constant 0 : index
        %c0_67 = arith.constant 0 : index
        %113 = vector.load %arg11[%c0_66, %c0_67] : memref<8x1xf32, #tpu.memory_space<vmem>>, vector<8x1xf32>
        tpu.vector_store %arg11[%c0_66, %c0_67], %112 {strides = array<i32>} : memref<8x1xf32, #tpu.memory_space<vmem>>, vector<8x1xf32>,
      } else {
      }
    } else {
    }
    %c1_i32 = arith.constant 1 : i32
    %12 = arith.cmpi eq, %arg0, %c1_i32 : i32
    %13 = arith.extui %12 : i1 to i32
    %c0_i32_8 = arith.constant 0 : i32
    %14 = arith.cmpi ne, %13, %c0_i32_8 : i32
    scf.if %14 {
      %cst = arith.constant dense<0.000000e+00> : vector<8x8xf32>
      %15 = tpu.matmul %8, %3, %cst {dimension_numbers = #tpu.dot_dimension_numbers<[1], [1], [0], [0], [0, 0, 1, 0], [], []>} : vector<8x32xf32>, vector<8x32xf32>, vector<8x8xf32> -> vector<8x8xf32>
      %16 = vector.broadcast %0 : f32 to vector<8x8xf32>
      %17 = arith.mulf %15, %16 : vector<8x8xf32>
      %cst_9 = arith.constant dense<0.000000e+00> : vector<8x8xf32>
      %18 = tpu.matmul %6, %3, %cst_9 {dimension_numbers = #tpu.dot_dimension_numbers<[1], [1], [0], [0], [0, 0, 1, 0], [], []>} : vector<8x32xf32>, vector<8x32xf32>, vector<8x8xf32> -> vector<8x8xf32>
      %cst_10 = arith.constant dense<0.000000e+00> : vector<8x8xf32>
      %19 = tpu.matmul %8, %4, %cst_10 {dimension_numbers = #tpu.dot_dimension_numbers<[1], [1], [0], [0], [0, 0, 1, 0], [], []>} : vector<8x32xf32>, vector<8x32xf32>, vector<8x8xf32> -> vector<8x8xf32>
      %20 = arith.addf %18, %19 : vector<8x8xf32>
      %cst_11 = arith.constant 5.000000e-01 : f32
      %21 = arith.mulf %cst_11, %0 : f32
      %22 = vector.broadcast %21 : f32 to vector<8x8xf32>
      %23 = arith.mulf %20, %22 : vector<8x8xf32>
      %24 = arith.index_cast %2 : i32 to index
      %c0_12 = arith.constant 0 : index
      %25 = vector.load %arg11[%24, %c0_12] : memref<8x1xf32, #tpu.memory_space<vmem>>, vector<8x1xf32>
      %26 = vector.broadcast %25 : vector<8x1xf32> to vector<8x8xf32>
      %27 = arith.subf %23, %26 : vector<8x8xf32>
      %c0_i32_13 = arith.constant 0 : i32
      %28 = arith.cmpi eq, %arg1, %c0_i32_13 : i32
      %29 = arith.extui %28 : i1 to i32
      %c0_i32_14 = arith.constant 0 : i32
      %30 = arith.cmpi ne, %29, %c0_i32_14 : i32
      scf.if %30 {
        %cst_32 = arith.constant 0xFF800000 : f32
        %57 = vector.broadcast %cst_32 : f32 to vector<1x8xf32>
        %c0_33 = arith.constant 0 : index
        %c0_34 = arith.constant 0 : index
        %58 = vector.load %arg12[%c0_33, %c0_34] : memref<1x8xf32, #tpu.memory_space<vmem>>, vector<1x8xf32>
        tpu.vector_store %arg12[%c0_33, %c0_34], %57 {strides = array<i32>} : memref<1x8xf32, #tpu.memory_space<vmem>>, vector<1x8xf32>,
        %cst_35 = arith.constant 0.000000e+00 : f32
        %59 = vector.broadcast %cst_35 : f32 to vector<1x8xf32>
        %c0_36 = arith.constant 0 : index
        %c0_37 = arith.constant 0 : index
        %60 = vector.load %arg13[%c0_36, %c0_37] : memref<1x8xf32, #tpu.memory_space<vmem>>, vector<1x8xf32>
        tpu.vector_store %arg13[%c0_36, %c0_37], %59 {strides = array<i32>} : memref<1x8xf32, #tpu.memory_space<vmem>>, vector<1x8xf32>,
      } else {
      }
      %cst_15 = arith.constant dense<0xFF800000> : vector<8xf32>
      %31 = vector.multi_reduction <maximumf>, %27, %cst_15 [0] : vector<8x8xf32> to vector<8xf32>
      %32 = vector.shape_cast %31 : vector<8xf32> to vector<1x8xf32>
      %33 = tpu.iota {dimensions = array<i32: 0>} : vector<8x8xi32>
      %34 = vector.broadcast %32 : vector<1x8xf32> to vector<8x8xf32>
      %35 = arith.cmpf oeq, %27, %34 : vector<8x8xf32>
      %c8_i32_16 = arith.constant 8 : i32
      %36 = vector.broadcast %c8_i32_16 : i32 to vector<8x8xi32>
      %37 = arith.select %35, %33, %36 : vector<8x8xi1>, vector<8x8xi32>
      %cst_17 = arith.constant dense<2147483647> : vector<8xi32>
      %38 = vector.multi_reduction <minsi>, %37, %cst_17 [0] : vector<8x8xi32> to vector<8xi32>
      %39 = vector.shape_cast %38 : vector<8xi32> to vector<1x8xi32>
      %40 = vector.broadcast %39 : vector<1x8xi32> to vector<8x8xi32>
      %41 = arith.cmpi eq, %33, %40 : vector<8x8xi32>
      %cst_18 = arith.constant 0.000000e+00 : f32
      %42 = vector.broadcast %cst_18 : f32 to vector<8x8xf32>
      %43 = arith.select %41, %17, %42 : vector<8x8xi1>, vector<8x8xf32>
      %cst_19 = arith.constant dense<0.000000e+00> : vector<8xf32>
      %44 = vector.multi_reduction <add>, %43, %cst_19 [0] : vector<8x8xf32> to vector<8xf32>
      %45 = vector.shape_cast %44 : vector<8xf32> to vector<1x8xf32>
      %c0_20 = arith.constant 0 : index
      %c0_21 = arith.constant 0 : index
      %46 = vector.load %arg12[%c0_20, %c0_21] : memref<1x8xf32, #tpu.memory_space<vmem>>, vector<1x8xf32>
      %47 = arith.cmpf ogt, %32, %46 : vector<1x8xf32>
      %c0_22 = arith.constant 0 : index
      %c0_23 = arith.constant 0 : index
      %48 = vector.load %arg13[%c0_22, %c0_23] : memref<1x8xf32, #tpu.memory_space<vmem>>, vector<1x8xf32>
      %49 = arith.select %47, %45, %48 : vector<1x8xi1>, vector<1x8xf32>
      %c0_24 = arith.constant 0 : index
      %c0_25 = arith.constant 0 : index
      %50 = vector.load %arg13[%c0_24, %c0_25] : memref<1x8xf32, #tpu.memory_space<vmem>>, vector<1x8xf32>
      tpu.vector_store %arg13[%c0_24, %c0_25], %49 {strides = array<i32>} : memref<1x8xf32, #tpu.memory_space<vmem>>, vector<1x8xf32>,
      %c0_26 = arith.constant 0 : index
      %c0_27 = arith.constant 0 : index
      %51 = vector.load %arg12[%c0_26, %c0_27] : memref<1x8xf32, #tpu.memory_space<vmem>>, vector<1x8xf32>
      %52 = arith.maximumf %51, %32 : vector<1x8xf32>
      %c0_28 = arith.constant 0 : index
      %c0_29 = arith.constant 0 : index
      %53 = vector.load %arg12[%c0_28, %c0_29] : memref<1x8xf32, #tpu.memory_space<vmem>>, vector<1x8xf32>
      tpu.vector_store %arg12[%c0_28, %c0_29], %52 {strides = array<i32>} : memref<1x8xf32, #tpu.memory_space<vmem>>, vector<1x8xf32>,
      %c0_i32_30 = arith.constant 0 : i32
      %54 = arith.cmpi eq, %arg1, %c0_i32_30 : i32
      %55 = arith.extui %54 : i1 to i32
      %c0_i32_31 = arith.constant 0 : i32
      %56 = arith.cmpi ne, %55, %c0_i32_31 : i32
      scf.if %56 {
        %c1 = arith.constant 1 : index
        %57 = memref.load %arg14[%c1] : memref<2xf32, #tpu.memory_space<smem>>
        %c0_32 = arith.constant 0 : index
        %c0_33 = arith.constant 0 : index
        %58 = vector.load %arg13[%c0_32, %c0_33] : memref<1x8xf32, #tpu.memory_space<vmem>>, vector<1x8xf32>
        %59 = vector.shape_cast %58 : vector<1x8xf32> to vector<1x1x8xf32>
        %cst_34 = arith.constant dense<0.000000e+00> : vector<1xf32>
        %60 = vector.multi_reduction <add>, %59, %cst_34 [1, 2] : vector<1x1x8xf32> to vector<1xf32>
        %61 = vector.shape_cast %60 : vector<1xf32> to vector<1x1x1xf32>
        %62 = vector.extract %61[0, 0, 0] : f32 from vector<1x1x1xf32>
        %63 = arith.subf %57, %62 : f32
        %c0_35 = arith.constant 0 : index
        %64 = memref.load %arg14[%c0_35] : memref<2xf32, #tpu.memory_space<smem>>
        %65 = arith.addf %64, %63 : f32
        %cst_36 = arith.constant 1.600000e+01 : f32
        %66 = arith.divf %65, %cst_36 : f32
        %c0_37 = arith.constant 0 : index
        %c0_38 = arith.constant 0 : index
        %67 = memref.load %arg5[%c0_37, %c0_38] : memref<1x1xf32, #tpu.memory_space<smem>>
        memref.store %66, %arg5[%c0_37, %c0_38] : memref<1x1xf32, #tpu.memory_space<smem>>
      } else {
      }
    } else {
    }
    return
  }
  func.func @transform_0(%arg0: i32, %arg1: i32) -> (i32, i32) {
    %c0_i32 = arith.constant 0 : i32
    %c0_i32_0 = arith.constant 0 : i32
    %c0_i32_1 = arith.constant 0 : i32
    return %c0_i32, %c0_i32_0 : i32, i32
  }
  func.func @transform_1(%arg0: i32, %arg1: i32) -> (i32, i32) {
    %c0_i32 = arith.constant 0 : i32
    %c0_i32_0 = arith.constant 0 : i32
    %c0_i32_1 = arith.constant 0 : i32
    return %c0_i32, %c0_i32_0 : i32, i32
  }
  func.func @transform_2(%arg0: i32, %arg1: i32) -> (i32, i32) {
    %c0_i32 = arith.constant 0 : i32
    %c0_i32_0 = arith.constant 0 : i32
    %c0_i32_1 = arith.constant 0 : i32
    return %c0_i32, %c0_i32_0 : i32, i32
  }
  func.func @transform_3(%arg0: i32, %arg1: i32) -> (i32, i32) {
    %c0_i32 = arith.constant 0 : i32
    %c0_i32_0 = arith.constant 0 : i32
    %c0_i32_1 = arith.constant 0 : i32
    return %c0_i32, %c0_i32_0 : i32, i32
  }
}

</mosaic_0001>

<llo_original>
// kernel: tpu_custom_call.1
$region0: #{tpu_custom_call.1}
  #allocation0 [shape = 'u32[]', space=smem, size = 0x4, offset = 0x4, fixed_abs, tag = 'smem constant byte address 0x4 - core index']
  #allocation1 [shape = 'u32[144,128]{1,0:T(1,128)}', space=vmem, size = 0x12000, scoped, tag = 'internal scratch']
  #allocation2 [shape = 'f32[8,1]{1,0:T(8,128)}', space=vmem, size = 0x1000, scoped, tag = 'scratch operand']
  #allocation3 [shape = 'f32[8,1]{1,0:T(8,128)}', space=vmem, size = 0x1000, scoped, tag = 'scratch operand']
  #allocation4 [shape = 'f32[8,1]{1,0:T(8,128)}', space=vmem, size = 0x1000, scoped, tag = 'scratch operand']
  #allocation5 [shape = 'f32[8,1]{1,0:T(8,128)}', space=vmem, size = 0x1000, scoped, tag = 'scratch operand']
  #allocation6 [shape = 'f32[8,1]{1,0:T(8,128)}', space=vmem, size = 0x1000, scoped, tag = 'scratch operand']
  #allocation7 [shape = 'f32[8,1]{1,0:T(8,128)}', space=vmem, size = 0x1000, scoped, tag = 'scratch operand']
  #allocation8 [shape = 'f32[1,8]{1,0:T(1,128)}', space=vmem, size = 0x200, scoped, tag = 'scratch operand']
  #allocation9 [shape = 'f32[1,8]{1,0:T(1,128)}', space=vmem, size = 0x200, scoped, tag = 'scratch operand']
  #allocation10 [shape = 'f32[2]{0:T(128)}', space=smem, size = 0x200, scoped, tag = 'scratch operand']
  #allocation11 [shape = 'f32[1,1]{1,0:T(1,128)S(6)}', space=smem, size = 0x200, scoped, tag = 'scoped memory for tpu_custom_call.1']
  %s0 = inlined_call_operand.<no memory space> [shape: f32[1,1], index: 0, kind: input, shape index: {}]
  %s1 = inlined_call_operand.hbm [shape: f32[8,32], index: 1, kind: input, shape index: {}]
  %s2 = inlined_call_operand.hbm [shape: f32[8,32], index: 2, kind: input, shape index: {}]
  %s3 = inlined_call_operand.hbm [shape: f32[1,1], index: 3, kind: output, shape index: {}]
  %s4 = sld [smem:[#allocation0]]
  $region77: #{tpu_custom_call.1} parent=0
    _
  %s6 = ssub.s32 1, %s4
  %s7 = scalar_select 0, %s6, %s4
  %8 = sst [smem:[#allocation11]] %s0
  $region1: #{tpu_custom_call.1} parent=0
    #allocation12 [shape = 'u8[4096]{0}', space=vmem, size = 0x1000, scoped, tag = 'input window, operand 1, single buffered']
    #allocation13 [shape = 's32[2]{0}', space=sflag, size = 0x8, scoped, tag = 'scoped memory for tpu_custom_call.1']
    #allocation14 [shape = 's32[2]{0}', space=sflag, size = 0x8, scoped, tag = 'scoped memory for tpu_custom_call.1']
    #allocation15 [shape = 'u8[4096]{0}', space=vmem, size = 0x1000, scoped, tag = 'input window, operand 2, single buffered']
    #allocation16 [shape = 's32[1]{0}', space=sflag, size = 0x4, scoped, tag = 'scoped memory for tpu_custom_call.1']
    #allocation17 [shape = 'u8[512]{0}', space=smem, size = 0x200, scoped, tag = 'output window, operand 0, single buffered']
    %9 = vsyncpa [#allocation13], 0
    %10 = vsyncpa [#allocation16], 0
    %11 = vsyncpa [#allocation14], 0
    loop: start=0, step=1, limit=4
    $region2: #{tpu_custom_call.1} parent=1 // loop_pre_header
      _
    $region3: #{tpu_custom_call.1} parent=1 // loop_header
      %s13 = sphi 0, %s17
      %p14 = scmp.ge.s32.totalorder %s13, 4
      %s20 = sphi 0, %s32
      %s21 = sphi 0, %s28
      %s22 = sphi 0, %s20
      %s23 = sphi 0, %s21
      %s24 = sphi 0, %s22
      %s25 = sphi 0, %s23
      %s33 = sphi 0, %s33
      %s35 = sphi 0, %s33
      %s36 = sphi 0, %s35
      %s50 = sphi 0, %s36
      %s54 = sphi 0, %s54
      %s56 = sphi 0, %s54
      %s57 = sphi 0, %s56
      %s71 = sphi 0, %s57
      %s75 = sphi 0, %s75
      %s77 = sphi 0, %s75
      %s78 = sphi 0, %s77
      %s92 = sphi 0, %s78
      %s96 = sphi 0, %s96
      %s98 = sphi 0, %s96
      %s99 = sphi 0, %s98
      %s113 = sphi 0, %s99
    $region4: #{tpu_custom_call.1} parent=1 // loop_header_branch
      %16 = sbr.rel (%p14) target = $region8
    $region5: #{tpu_custom_call.1} parent=1 // loop_body
      %s18 = ssub.s32 %s13, 1
      %s19 = ssub.s32 %s13, 2
      %s26 = sadd.s32 1, %s21
      %p27 = scmp.ge.s32.totalorder %s26, 1
      %s28 = scalar_select %p27, 0, %s26
      %s29 = sadd.s32 1, %s20
      %s30 = scalar_select %p27, %s29, %s20
      %p31 = scmp.ge.s32.totalorder %s30, 2
      %s32 = scalar_select %p31, 0, %s30
      %s34 = sadd.s32 %s33, 1
      %p37 = scmp.eq.s32.totalorder %s13, 1
      %p38 = scmp.ne.s32.totalorder %s33, %s35
      %p39 = scmp.eq.s32.totalorder %s13, 0
      %p40 = por %p38, %p39
      %p41 = scmp.ne.s32.totalorder %s33, %s35
      %p42 = scmp.eq.s32.totalorder %s18, 1
      %p43 = por %p41, %p42
      %p44 = scmp.ne.s32.totalorder %s35, %s36
      %p45 = scmp.eq.s32.totalorder %s18, 0
      %p46 = por %p44, %p45
      %p47 = scmp.ne.s32.totalorder %s35, %s36
      %p48 = scmp.eq.s32.totalorder %s19, 1
      %p49 = por %p47, %p48
      %p51 = scmp.ne.s32.totalorder %s36, %s50
      %p52 = scmp.eq.s32.totalorder %s19, 0
      %p53 = por %p51, %p52
      %s55 = sadd.s32 %s54, 1
      %p58 = scmp.eq.s32.totalorder %s13, 1
      %p59 = scmp.ne.s32.totalorder %s54, %s56
      %p60 = scmp.eq.s32.totalorder %s13, 0
      %p61 = por %p59, %p60
      %p62 = scmp.ne.s32.totalorder %s54, %s56
      %p63 = scmp.eq.s32.totalorder %s18, 1
      %p64 = por %p62, %p63
      %p65 = scmp.ne.s32.totalorder %s56, %s57
      %p66 = scmp.eq.s32.totalorder %s18, 0
      %p67 = por %p65, %p66
      %p68 = scmp.ne.s32.totalorder %s56, %s57
      %p69 = scmp.eq.s32.totalorder %s19, 1
      %p70 = por %p68, %p69
      %p72 = scmp.ne.s32.totalorder %s57, %s71
      %p73 = scmp.eq.s32.totalorder %s19, 0
      %p74 = por %p72, %p73
      %s76 = sadd.s32 %s75, 1
      %p79 = scmp.eq.s32.totalorder %s13, 1
      %p80 = scmp.ne.s32.totalorder %s75, %s77
      %p81 = scmp.eq.s32.totalorder %s13, 0
      %p82 = por %p80, %p81
      %p83 = scmp.ne.s32.totalorder %s75, %s77
      %p84 = scmp.eq.s32.totalorder %s18, 1
      %p85 = por %p83, %p84
      %p86 = scmp.ne.s32.totalorder %s77, %s78
      %p87 = scmp.eq.s32.totalorder %s18, 0
      %p88 = por %p86, %p87
      %p89 = scmp.ne.s32.totalorder %s77, %s78
      %p90 = scmp.eq.s32.totalorder %s19, 1
      %p91 = por %p89, %p90
      %p93 = scmp.ne.s32.totalorder %s78, %s92
      %p94 = scmp.eq.s32.totalorder %s19, 0
      %p95 = por %p93, %p94
      %s97 = sadd.s32 %s96, 1
      %p100 = scmp.eq.s32.totalorder %s13, 1
      %p101 = scmp.ne.s32.totalorder %s96, %s98
      %p102 = scmp.eq.s32.totalorder %s13, 0
      %p103 = por %p101, %p102
      %p104 = scmp.ne.s32.totalorder %s96, %s98
      %p105 = scmp.eq.s32.totalorder %s18, 1
      %p106 = por %p104, %p105
      %p107 = scmp.ne.s32.totalorder %s98, %s99
      %p108 = scmp.eq.s32.totalorder %s18, 0
      %p109 = por %p107, %p108
      %p110 = scmp.ne.s32.totalorder %s98, %s99
      %p111 = scmp.eq.s32.totalorder %s19, 1
      %p112 = por %p110, %p111
      %p114 = scmp.ne.s32.totalorder %s99, %s113
      %p115 = scmp.eq.s32.totalorder %s19, 0
      %p116 = por %p114, %p115
      %p117 = scmp.le.s32.totalorder 1, %s13
      %p118 = scmp.lt.s32.totalorder %s13, 3
      %p119 = pnand %p117, %p118
      %p120 = pneg %p119
      // Predicated region
      $region9: #{tpu_custom_call.1} parent=5 // pred_check
        _
      $region10: #{tpu_custom_call.1} parent=5 // pred_check_branch
        %122 = sbr.rel (%p119) target = $region12
      $region11: #{tpu_custom_call.1} parent=5 // pred_region
        %s123 = ssub.s32 %s13, 1
        // Predicated region
        $region13: #{tpu_custom_call.1} parent=11 // pred_check
          %p124 = pneg %p46
        $region14: #{tpu_custom_call.1} parent=11 // pred_check_branch
          %126 = sbr.rel (%p124) target = $region16
        $region15: #{tpu_custom_call.1} parent=11 // pred_region
          _
        $region16: #{tpu_custom_call.1} parent=11 // pred_fallthru
          _
        // Predicated region
        $region17: #{tpu_custom_call.1} parent=11 // pred_check
          %p127 = pneg %p67
        $region18: #{tpu_custom_call.1} parent=11 // pred_check_branch
          %129 = sbr.rel (%p127) target = $region20
        $region19: #{tpu_custom_call.1} parent=11 // pred_region
          %s131 = ssub.s32 128, 128
          %132 = vsyncadd [#allocation13], %s131
          %s134 = sshll.u32 [#allocation12], 4
          %s135 = int_to_ptr.vmem [resolvable:$true] %s134
          %137 = dma.hbm_to_vmem [thread:$0]  %s1, 128, %s135, [#allocation13]
        $region20: #{tpu_custom_call.1} parent=11 // pred_fallthru
          _
        // Predicated region
        $region21: #{tpu_custom_call.1} parent=11 // pred_check
          %p138 = pneg %p88
        $region22: #{tpu_custom_call.1} parent=11 // pred_check_branch
          %140 = sbr.rel (%p138) target = $region24
        $region23: #{tpu_custom_call.1} parent=11 // pred_region
          %s142 = ssub.s32 128, 128
          %143 = vsyncadd [#allocation16], %s142
          %s145 = sshll.u32 [#allocation15], 4
          %s146 = int_to_ptr.vmem [resolvable:$true] %s145
          %148 = dma.hbm_to_vmem [thread:$0]  %s2, 128, %s146, [#allocation16]
        $region24: #{tpu_custom_call.1} parent=11 // pred_fallthru
          _
      $region12: #{tpu_custom_call.1} parent=5 // pred_fallthru
        _
      %p149 = scmp.lt.s32.totalorder %s13, 2
      // Predicated region
      $region25: #{tpu_custom_call.1} parent=5 // pred_check
        %p150 = pneg %p149
      $region26: #{tpu_custom_call.1} parent=5 // pred_check_branch
        %152 = sbr.rel (%p150) target = $region28
      $region27: #{tpu_custom_call.1} parent=5 // pred_region
        _
      $region28: #{tpu_custom_call.1} parent=5 // pred_fallthru
        _
      %p153 = scmp.le.s32.totalorder 1, %s13
      %p154 = scmp.lt.s32.totalorder %s13, 3
      %p155 = pnand %p153, %p154
      %p156 = pneg %p155
      // Predicated region
      $region29: #{tpu_custom_call.1} parent=5 // pred_check
        _
      $region30: #{tpu_custom_call.1} parent=5 // pred_check_branch
        %158 = sbr.rel (%p155) target = $region32
      $region31: #{tpu_custom_call.1} parent=5 // pred_region
        %s159 = ssub.s32 %s13, 1
        // Predicated region
        $region33: #{tpu_custom_call.1} parent=31 // pred_check
          %p160 = pneg %p67
        $region34: #{tpu_custom_call.1} parent=31 // pred_check_branch
          %162 = sbr.rel (%p160) target = $region36
        $region35: #{tpu_custom_call.1} parent=31 // pred_region
          %163 = dma.done [#allocation13], 128
        $region36: #{tpu_custom_call.1} parent=31 // pred_fallthru
          _
        // Predicated region
        $region37: #{tpu_custom_call.1} parent=31 // pred_check
          %p164 = pneg %p88
        $region38: #{tpu_custom_call.1} parent=31 // pred_check_branch
          %166 = sbr.rel (%p164) target = $region40
        $region39: #{tpu_custom_call.1} parent=31 // pred_region
          %167 = dma.done [#allocation16], 128
        $region40: #{tpu_custom_call.1} parent=31 // pred_fallthru
          _
        %p168 = pneg %p46
        %p169 = pneg %p43
        %p170 = pneg %p67
        %p171 = pneg %p64
        %p172 = pneg %p88
        %p173 = pneg %p85
        %p174 = pneg %p109
        %p175 = pneg %p106
        %s176 = sld [smem:[#allocation11]]
        %s177 = smul.u32 %s23, 8
        %v178 = vld [vmem:[#allocation12] sm:$0xff]
        %v179 = vld [vmem:[#allocation15] sm:$0xff]
        %s180 = scalar_lea.vmem [#allocation12], %s177
        %v181 = vld [vmem:[%s180] sm:$0xff]
        %s182 = scalar_lea.vmem [#allocation15], %s177
        %v183 = vld [vmem:[%s182] sm:$0xff]
        %p184 = scmp.eq.s32.totalorder %s22, 0
        // Predicated region
        $region41: #{tpu_custom_call.1} parent=31 // pred_check
          %p185 = pneg %p184
        $region42: #{tpu_custom_call.1} parent=31 // pred_check_branch
          %187 = sbr.rel (%p185) target = $region44
        $region43: #{tpu_custom_call.1} parent=31 // pred_region
          %vm188 = vcmask 261120
          %v190 = vsel %vm188, %v179, 0
          %v193 = vsel %vm188, %v181, 0
          %195 = vmatprep.subr.mxu0 0.0
          %196 = vmatpush1.xpose.msra.mxu0 %v193
          %197 = vmatprep.subr.mxu0 0.0
          %198 = vmatpush1.xpose.msra.mxu0 0.0
          %199 = vmatprep.subr.mxu0 0.0
          %200 = vmatpush1.xpose.msra.mxu0 0.0
          %201 = vmatprep.subr.mxu0 0.0
          %202 = vmatpush1.xpose.msra.mxu0 0.0
          %203 = vmatprep.subr.mxu0 0.0
          %204 = vmatpush1.xpose.msra.mxu0 0.0
          %205 = vmatprep.subr.mxu0 0.0
          %206 = vmatpush1.xpose.msra.mxu0 0.0
          %207 = vmatprep.subr.mxu0 0.0
          %208 = vmatpush1.xpose.msra.mxu0 0.0
          %209 = vmatprep.subr.mxu0 0.0
          %210 = vmatpush1.xpose.msra.mxu0 0.0
          %211 = vmatprep.subr.mxu0 0.0
          %212 = vmatpush1.xpose.msra.mxu0 0.0
          %213 = vmatprep.subr.mxu0 0.0
          %214 = vmatpush1.xpose.msra.mxu0 0.0
          %215 = vmatprep.subr.mxu0 0.0
          %216 = vmatpush1.xpose.msra.mxu0 0.0
          %217 = vmatprep.subr.mxu0 0.0
          %218 = vmatpush1.xpose.msra.mxu0 0.0
          %219 = vmatprep.subr.mxu0 0.0
          %220 = vmatpush1.xpose.msra.mxu0 0.0
          %221 = vmatprep.subr.mxu0 0.0
          %222 = vmatpush1.xpose.msra.mxu0 0.0
          %223 = vmatprep.subr.mxu0 0.0
          %224 = vmatpush1.xpose.msra.mxu0 0.0
          %225 = vmatprep.subr.mxu0 0.0
          %226 = vmatpush1.xpose.msra.mxu0 0.0
          %227 = vmatprep.subr.mxu0 0.0
          %228 = vmatpush1.xpose.msra.mxu0 0.0
          %229 = vmatprep.subr.mxu0 0.0
          %230 = vmatpush1.xpose.msra.mxu0 0.0
          %231 = vmatprep.subr.mxu0 0.0
          %232 = vmatpush1.xpose.msra.mxu0 0.0
          %233 = vmatprep.subr.mxu0 0.0
          %234 = vmatpush1.xpose.msra.mxu0 0.0
          %235 = vmatprep.subr.mxu0 0.0
          %236 = vmatpush1.xpose.msra.mxu0 0.0
          %237 = vmatprep.subr.mxu0 0.0
          %238 = vmatpush1.xpose.msra.mxu0 0.0
          %239 = vmatprep.subr.mxu0 0.0
          %240 = vmatpush1.xpose.msra.mxu0 0.0
          %241 = vmatprep.subr.mxu0 0.0
          %242 = vmatpush1.xpose.msra.mxu0 0.0
          %243 = vmatprep.subr.mxu0 0.0
          %244 = vmatpush1.xpose.msra.mxu0 0.0
          %245 = vmatprep.subr.mxu0 0.0
          %246 = vmatpush1.xpose.msra.mxu0 0.0
          %247 = vmatprep.subr.mxu0 0.0
          %248 = vmatpush1.xpose.msra.mxu0 0.0
          %249 = vmatprep.subr.mxu0 0.0
          %250 = vmatpush1.xpose.msra.mxu0 0.0
          %251 = vmatprep.subr.mxu0 0.0
          %252 = vmatpush1.xpose.msra.mxu0 0.0
          %253 = vmatprep.subr.mxu0 0.0
          %254 = vmatpush1.xpose.msra.mxu0 0.0
          %255 = vmatprep.subr.mxu0 0.0
          %256 = vmatpush1.xpose.msra.mxu0 0.0
          %257 = vmatprep.subr.mxu0 0.0
          %258 = vmatpush1.xpose.msra.mxu0 0.0
          %259 = vmatprep.mubr.f32.mxu0 0.0
          %260 = vmatmul.mubr.f32.gmra.mrb[0].mxu0 %v190
          %v261 = vpop.f32.mrb[0].mxu0
          %v262 = vadd.f32 0.0, %v261
          %v263 = vpop.f32.mrb[0].mxu0
          %264 = vdwg.mxu0
          %v265 = vstv %s176
          %v266 = vmul.f32 %v262, %v265
          %v268 = vsel %vm188, %v183, 0
          %270 = vmatprep.subr.mxu0 0.0
          %271 = vmatpush1.xpose.msra.mxu0 %v268
          %272 = vmatprep.subr.mxu0 0.0
          %273 = vmatpush1.xpose.msra.mxu0 0.0
          %274 = vmatprep.subr.mxu0 0.0
          %275 = vmatpush1.xpose.msra.mxu0 0.0
          %276 = vmatprep.subr.mxu0 0.0
          %277 = vmatpush1.xpose.msra.mxu0 0.0
          %278 = vmatprep.subr.mxu0 0.0
          %279 = vmatpush1.xpose.msra.mxu0 0.0
          %280 = vmatprep.subr.mxu0 0.0
          %281 = vmatpush1.xpose.msra.mxu0 0.0
          %282 = vmatprep.subr.mxu0 0.0
          %283 = vmatpush1.xpose.msra.mxu0 0.0
          %284 = vmatprep.subr.mxu0 0.0
          %285 = vmatpush1.xpose.msra.mxu0 0.0
          %286 = vmatprep.subr.mxu0 0.0
          %287 = vmatpush1.xpose.msra.mxu0 0.0
          %288 = vmatprep.subr.mxu0 0.0
          %289 = vmatpush1.xpose.msra.mxu0 0.0
          %290 = vmatprep.subr.mxu0 0.0
          %291 = vmatpush1.xpose.msra.mxu0 0.0
          %292 = vmatprep.subr.mxu0 0.0
          %293 = vmatpush1.xpose.msra.mxu0 0.0
          %294 = vmatprep.subr.mxu0 0.0
          %295 = vmatpush1.xpose.msra.mxu0 0.0
          %296 = vmatprep.subr.mxu0 0.0
          %297 = vmatpush1.xpose.msra.mxu0 0.0
          %298 = vmatprep.subr.mxu0 0.0
          %299 = vmatpush1.xpose.msra.mxu0 0.0
          %300 = vmatprep.subr.mxu0 0.0
          %301 = vmatpush1.xpose.msra.mxu0 0.0
          %302 = vmatprep.subr.mxu0 0.0
          %303 = vmatpush1.xpose.msra.mxu0 0.0
          %304 = vmatprep.subr.mxu0 0.0
          %305 = vmatpush1.xpose.msra.mxu0 0.0
          %306 = vmatprep.subr.mxu0 0.0
          %307 = vmatpush1.xpose.msra.mxu0 0.0
          %308 = vmatprep.subr.mxu0 0.0
          %309 = vmatpush1.xpose.msra.mxu0 0.0
          %310 = vmatprep.subr.mxu0 0.0
          %311 = vmatpush1.xpose.msra.mxu0 0.0
          %312 = vmatprep.subr.mxu0 0.0
          %313 = vmatpush1.xpose.msra.mxu0 0.0
          %314 = vmatprep.subr.mxu0 0.0
          %315 = vmatpush1.xpose.msra.mxu0 0.0
          %316 = vmatprep.subr.mxu0 0.0
          %317 = vmatpush1.xpose.msra.mxu0 0.0
          %318 = vmatprep.subr.mxu0 0.0
          %319 = vmatpush1.xpose.msra.mxu0 0.0
          %320 = vmatprep.subr.mxu0 0.0
          %321 = vmatpush1.xpose.msra.mxu0 0.0
          %322 = vmatprep.subr.mxu0 0.0
          %323 = vmatpush1.xpose.msra.mxu0 0.0
          %324 = vmatprep.subr.mxu0 0.0
          %325 = vmatpush1.xpose.msra.mxu0 0.0
          %326 = vmatprep.subr.mxu0 0.0
          %327 = vmatpush1.xpose.msra.mxu0 0.0
          %328 = vmatprep.subr.mxu0 0.0
          %329 = vmatpush1.xpose.msra.mxu0 0.0
          %330 = vmatprep.subr.mxu0 0.0
          %331 = vmatpush1.xpose.msra.mxu0 0.0
          %332 = vmatprep.subr.mxu0 0.0
          %333 = vmatpush1.xpose.msra.mxu0 0.0
          %334 = vmatprep.mubr.f32.mxu0 0.0
          %335 = vmatmul.mubr.f32.gmra.mrb[0].mxu0 %v190
          %v336 = vpop.f32.mrb[0].mxu0
          %v337 = vadd.f32 0.0, %v336
          %v338 = vpop.f32.mrb[0].mxu0
          %339 = vdwg.mxu0
          %v341 = vsel %vm188, %v178, 0
          %343 = vmatprep.subr.mxu0 0.0
          %344 = vmatpush1.xpose.msra.mxu0 %v193
          %345 = vmatprep.subr.mxu0 0.0
          %346 = vmatpush1.xpose.msra.mxu0 0.0
          %347 = vmatprep.subr.mxu0 0.0
          %348 = vmatpush1.xpose.msra.mxu0 0.0
          %349 = vmatprep.subr.mxu0 0.0
          %350 = vmatpush1.xpose.msra.mxu0 0.0
          %351 = vmatprep.subr.mxu0 0.0
          %352 = vmatpush1.xpose.msra.mxu0 0.0
          %353 = vmatprep.subr.mxu0 0.0
          %354 = vmatpush1.xpose.msra.mxu0 0.0
          %355 = vmatprep.subr.mxu0 0.0
          %356 = vmatpush1.xpose.msra.mxu0 0.0
          %357 = vmatprep.subr.mxu0 0.0
          %358 = vmatpush1.xpose.msra.mxu0 0.0
          %359 = vmatprep.subr.mxu0 0.0
          %360 = vmatpush1.xpose.msra.mxu0 0.0
          %361 = vmatprep.subr.mxu0 0.0
          %362 = vmatpush1.xpose.msra.mxu0 0.0
          %363 = vmatprep.subr.mxu0 0.0
          %364 = vmatpush1.xpose.msra.mxu0 0.0
          %365 = vmatprep.subr.mxu0 0.0
          %366 = vmatpush1.xpose.msra.mxu0 0.0
          %367 = vmatprep.subr.mxu0 0.0
          %368 = vmatpush1.xpose.msra.mxu0 0.0
          %369 = vmatprep.subr.mxu0 0.0
          %370 = vmatpush1.xpose.msra.mxu0 0.0
          %371 = vmatprep.subr.mxu0 0.0
          %372 = vmatpush1.xpose.msra.mxu0 0.0
          %373 = vmatprep.subr.mxu0 0.0
          %374 = vmatpush1.xpose.msra.mxu0 0.0
          %375 = vmatprep.subr.mxu0 0.0
          %376 = vmatpush1.xpose.msra.mxu0 0.0
          %377 = vmatprep.subr.mxu0 0.0
          %378 = vmatpush1.xpose.msra.mxu0 0.0
          %379 = vmatprep.subr.mxu0 0.0
          %380 = vmatpush1.xpose.msra.mxu0 0.0
          %381 = vmatprep.subr.mxu0 0.0
          %382 = vmatpush1.xpose.msra.mxu0 0.0
          %383 = vmatprep.subr.mxu0 0.0
          %384 = vmatpush1.xpose.msra.mxu0 0.0
          %385 = vmatprep.subr.mxu0 0.0
          %386 = vmatpush1.xpose.msra.mxu0 0.0
          %387 = vmatprep.subr.mxu0 0.0
          %388 = vmatpush1.xpose.msra.mxu0 0.0
          %389 = vmatprep.subr.mxu0 0.0
          %390 = vmatpush1.xpose.msra.mxu0 0.0
          %391 = vmatprep.subr.mxu0 0.0
          %392 = vmatpush1.xpose.msra.mxu0 0.0
          %393 = vmatprep.subr.mxu0 0.0
          %394 = vmatpush1.xpose.msra.mxu0 0.0
          %395 = vmatprep.subr.mxu0 0.0
          %396 = vmatpush1.xpose.msra.mxu0 0.0
          %397 = vmatprep.subr.mxu0 0.0
          %398 = vmatpush1.xpose.msra.mxu0 0.0
          %399 = vmatprep.subr.mxu0 0.0
          %400 = vmatpush1.xpose.msra.mxu0 0.0
          %401 = vmatprep.subr.mxu0 0.0
          %402 = vmatpush1.xpose.msra.mxu0 0.0
          %403 = vmatprep.subr.mxu0 0.0
          %404 = vmatpush1.xpose.msra.mxu0 0.0
          %405 = vmatprep.subr.mxu0 0.0
          %406 = vmatpush1.xpose.msra.mxu0 0.0
          %407 = vmatprep.mubr.f32.mxu0 0.0
          %408 = vmatmul.mubr.f32.gmra.mrb[0].mxu0 %v341
          %v409 = vpop.f32.mrb[0].mxu0
          %v410 = vadd.f32 %v337, %v409
          %v411 = vpop.f32.mrb[0].mxu0
          %412 = vdwg.mxu0
          %s413 = smul.f32 %s176, 0.5
          %v414 = vstv %s413
          %v415 = vmul.f32 %v410, %v414
          %p416 = scmp.eq.s32.totalorder %s23, 0
          // Predicated region
          $region45: #{tpu_custom_call.1} parent=43 // pred_check
            %p417 = pneg %p416
          $region46: #{tpu_custom_call.1} parent=43 // pred_check_branch
            %419 = sbr.rel (%p417) target = $region48
          $region47: #{tpu_custom_call.1} parent=43 // pred_region
            %vm420 = vcmask 7168
            %421 = vst.msk [vmem:[#allocation2] sm:$0xff] %vm420, -inf
            %422 = vst.msk [vmem:[#allocation3] sm:$0xff] %vm420, 0.0
            %423 = vst.msk [vmem:[#allocation4] sm:$0xff] %vm420, -inf
            %424 = vst.msk [vmem:[#allocation5] sm:$0xff] %vm420, 0.0
            %425 = vst.msk [vmem:[#allocation6] sm:$0xff] %vm420, 0.0
            %s426 = scalar_lea.smem [#allocation10], 1
            %427 = sst [smem:[%s426]] 0.0
          $region48: #{tpu_custom_call.1} parent=43 // pred_fallthru
            _
          %vm428 = vcmask 64512
          %v429 = vsel %vm428, %v266, -inf
          %430 = vmax.xlane.f32.xlu0 %v429
          %v431 = vpop.xlane.xlu0 %430
          %v432 = vld [vmem:[#allocation2] sm:$0xff]
          %v433 = vmax.f32 %v432, %v431
          %v434 = vld [vmem:[#allocation3] sm:$0xff]
          %v435 = vsub.f32 %v432, %v433
          %v436 = vmul.f32 %v435, 1.442695
          %v437 = vpow.pop %v436
          %v438 = vmul.f32 %v434, %v437
          %440 = vset.pattern.permute.xlu0 0
          %441 = vperm.xlu0 %440, %v433
          %v442 = vpop.permute.xlu0 %441
          %v444 = vsub.f32 %v266, %v442
          %v445 = vmul.f32 %v444, 1.442695
          %v446 = vpow.pop %v445
          %v447 = vsel %vm428, %v446, 0.0
          %448 = vadd.xlane.f32.xlu0 %v447
          %v449 = vpop.xlane.xlu0 %448
          %v450 = vadd.f32 %v438, %v449
          %vm451 = vcmask 7168
          %452 = vst.msk [vmem:[#allocation3] sm:$0xff] %vm451, %v450
          %453 = vst.msk [vmem:[#allocation2] sm:$0xff] %vm451, %v433
          %v454 = vrot.slane %v429, 4
          %v455 = vmax.f32 %v429, %v454
          %v456 = vrot.slane %v455, 2
          %v457 = vmax.f32 %v455, %v456
          %v458 = vrot.slane %v457, 1
          %v459 = vmax.f32 %v457, %v458
          %v460 = vsub.f32 %v266, %v459
          %v461 = vmul.f32 %v460, 1.442695
          %v462 = vpow.pop %v461
          %v463 = vsel %vm428, %v462, 0.0
          %v464 = vrot.slane %v463, 4
          %v465 = vadd.f32 %v463, %v464
          %v466 = vrot.slane %v465, 2
          %v467 = vadd.f32 %v465, %v466
          %v468 = vrot.slane %v467, 1
          %v469 = vadd.f32 %v467, %v468
          %v470 = vlog2.pop %v469
          %v471 = vmul.f32 %v470, 0.6931472
          %v472 = vadd.f32 %v459, %v471
          %s473 = sld [smem:[#allocation10 + $0x1]]
          %vm474 = vcmask 57344
          %v475 = vsel %vm474, %v472, 0.0
          %476 = vadd.xlane.f32.xlu0 %v475
          %v477 = vpop.xlane.xlu0 %476
          %v478 = vrot.slane %v477, 4
          %v479 = vadd.f32 %v477, %v478
          %v480 = vrot.slane %v479, 2
          %v481 = vadd.f32 %v479, %v480
          %v482 = vrot.slane %v481, 1
          %v483 = vadd.f32 %v481, %v482
          %s484 = vtos %v483
          %s485 = sadd.f32 %s473, %s484
          %s486 = scalar_lea.smem [#allocation10], 1
          %487 = sst [smem:[%s486]] %s485
          %v488 = vsel %vm428, %v415, -inf
          %489 = vmax.xlane.f32.xlu0 %v488
          %v490 = vpop.xlane.xlu0 %489
          %v491 = vlaneseq
          %v492 = vand.u32 %v491, 127
          %vm493 = vcmp.eq.f32.partialorder %v415, %v490
          %v494 = vsel %vm493, %v492, 8
          %v495 = vsel %vm428, %v494, 2147483647
          %v496 = vand.u32 %v495, 65535
          %v497 = vshra.s32 %v495, 16
          %v498 = vcvt.s32.f32 %v496
          %v499 = vcvt.s32.f32 %v497
          %500 = vmin.xlane.f32.xlu0 %v499
          %v501 = vpop.xlane.xlu0 %500
          %vm502 = vcmp.eq.f32.partialorder %v499, %v501
          %v503 = vsel %vm502, %v498, inf
          %504 = vmin.xlane.f32.xlu0 %v503
          %v505 = vpop.xlane.xlu0 %504
          %v506 = vcvt.f32.s32 %v505
          %v507 = vcvt.f32.s32 %v501
          %v508 = vshll.u32 %v507, 16
          %v509 = vadd.s32 %v508, %v506
          %vm510 = vcmp.eq.s32.totalorder %v492, %v509
          %v511 = vsel %vm510, %v266, 0.0
          %v512 = vsel %vm428, %v511, 0.0
          %513 = vadd.xlane.f32.xlu0 %v512
          %v514 = vpop.xlane.xlu0 %513
          %v515 = vld [vmem:[#allocation4] sm:$0xff]
          %vm516 = vcmp.gt.f32.partialorder %v490, %v515
          %v517 = vld [vmem:[#allocation6] sm:$0xff]
          %v518 = vsel %vm516, %v514, %v517
          %519 = vst.msk [vmem:[#allocation6] sm:$0xff] %vm451, %v518
          %v520 = vld [vmem:[#allocation4] sm:$0xff]
          %v521 = vmax.f32 %v520, %v490
          %v522 = vld [vmem:[#allocation5] sm:$0xff]
          %v523 = vsub.f32 %v520, %v521
          %v524 = vmul.f32 %v523, 1.442695
          %v525 = vpow.pop %v524
          %v526 = vmul.f32 %v522, %v525
          %528 = vset.pattern.permute.xlu0 0
          %529 = vperm.xlu0 %528, %v521
          %v530 = vpop.permute.xlu0 %529
          %v532 = vsub.f32 %v415, %v530
          %v533 = vmul.f32 %v532, 1.442695
          %v534 = vpow.pop %v533
          %v535 = vsel %vm428, %v534, 0.0
          %536 = vadd.xlane.f32.xlu0 %v535
          %v537 = vpop.xlane.xlu0 %536
          %v538 = vadd.f32 %v526, %v537
          %539 = vst.msk [vmem:[#allocation5] sm:$0xff] %vm451, %v538
          %540 = vst.msk [vmem:[#allocation4] sm:$0xff] %vm451, %v521
          // Predicated region
          $region49: #{tpu_custom_call.1} parent=43 // pred_check
            %p541 = pneg %p416
          $region50: #{tpu_custom_call.1} parent=43 // pred_check_branch
            %543 = sbr.rel (%p541) target = $region52
          $region51: #{tpu_custom_call.1} parent=43 // pred_region
            %v544 = vld [vmem:[#allocation2] sm:$0xff]
            %v545 = vld [vmem:[#allocation3] sm:$0xff]
            %v546 = vlog2.pop %v545
            %v547 = vmul.f32 %v546, 0.6931472
            %v548 = vadd.f32 %v544, %v547
            %v549 = vld [vmem:[#allocation6] sm:$0xff]
            %v550 = vsub.f32 %v548, %v549
            %v551 = vsel %vm451, %v550, 0.0
            %552 = vadd.xlane.f32.xlu0 %v551
            %v553 = vpop.xlane.xlu0 %552
            %v554 = vrot.slane %v553, 4
            %v555 = vadd.f32 %v553, %v554
            %v556 = vrot.slane %v555, 2
            %v557 = vadd.f32 %v555, %v556
            %v558 = vrot.slane %v557, 1
            %v559 = vadd.f32 %v557, %v558
            %s560 = vtos %v559
            %s561 = scalar_lea.smem [#allocation10], 0
            %562 = sst [smem:[%s561]] %s560
            %v563 = vld [vmem:[#allocation4] sm:$0xff]
            %v564 = vld [vmem:[#allocation5] sm:$0xff]
            %v565 = vlog2.pop %v564
            %v566 = vmul.f32 %v565, 0.6931472
            %v567 = vadd.f32 %v563, %v566
            %568 = vst.msk [vmem:[#allocation7] sm:$0xff] %vm451, %v567
          $region52: #{tpu_custom_call.1} parent=43 // pred_fallthru
            _
        $region44: #{tpu_custom_call.1} parent=31 // pred_fallthru
          _
        %p569 = scmp.eq.s32.totalorder %s22, 1
        // Predicated region
        $region53: #{tpu_custom_call.1} parent=31 // pred_check
          %p570 = pneg %p569
        $region54: #{tpu_custom_call.1} parent=31 // pred_check_branch
          %572 = sbr.rel (%p570) target = $region56
        $region55: #{tpu_custom_call.1} parent=31 // pred_region
          %vm573 = vcmask 261120
          %v575 = vsel %vm573, %v183, 0
          %v578 = vsel %vm573, %v178, 0
          %580 = vmatprep.subr.mxu0 0.0
          %581 = vmatpush1.xpose.msra.mxu0 %v578
          %582 = vmatprep.subr.mxu0 0.0
          %583 = vmatpush1.xpose.msra.mxu0 0.0
          %584 = vmatprep.subr.mxu0 0.0
          %585 = vmatpush1.xpose.msra.mxu0 0.0
          %586 = vmatprep.subr.mxu0 0.0
          %587 = vmatpush1.xpose.msra.mxu0 0.0
          %588 = vmatprep.subr.mxu0 0.0
          %589 = vmatpush1.xpose.msra.mxu0 0.0
          %590 = vmatprep.subr.mxu0 0.0
          %591 = vmatpush1.xpose.msra.mxu0 0.0
          %592 = vmatprep.subr.mxu0 0.0
          %593 = vmatpush1.xpose.msra.mxu0 0.0
          %594 = vmatprep.subr.mxu0 0.0
          %595 = vmatpush1.xpose.msra.mxu0 0.0
          %596 = vmatprep.subr.mxu0 0.0
          %597 = vmatpush1.xpose.msra.mxu0 0.0
          %598 = vmatprep.subr.mxu0 0.0
          %599 = vmatpush1.xpose.msra.mxu0 0.0
          %600 = vmatprep.subr.mxu0 0.0
          %601 = vmatpush1.xpose.msra.mxu0 0.0
          %602 = vmatprep.subr.mxu0 0.0
          %603 = vmatpush1.xpose.msra.mxu0 0.0
          %604 = vmatprep.subr.mxu0 0.0
          %605 = vmatpush1.xpose.msra.mxu0 0.0
          %606 = vmatprep.subr.mxu0 0.0
          %607 = vmatpush1.xpose.msra.mxu0 0.0
          %608 = vmatprep.subr.mxu0 0.0
          %609 = vmatpush1.xpose.msra.mxu0 0.0
          %610 = vmatprep.subr.mxu0 0.0
          %611 = vmatpush1.xpose.msra.mxu0 0.0
          %612 = vmatprep.subr.mxu0 0.0
          %613 = vmatpush1.xpose.msra.mxu0 0.0
          %614 = vmatprep.subr.mxu0 0.0
          %615 = vmatpush1.xpose.msra.mxu0 0.0
          %616 = vmatprep.subr.mxu0 0.0
          %617 = vmatpush1.xpose.msra.mxu0 0.0
          %618 = vmatprep.subr.mxu0 0.0
          %619 = vmatpush1.xpose.msra.mxu0 0.0
          %620 = vmatprep.subr.mxu0 0.0
          %621 = vmatpush1.xpose.msra.mxu0 0.0
          %622 = vmatprep.subr.mxu0 0.0
          %623 = vmatpush1.xpose.msra.mxu0 0.0
          %624 = vmatprep.subr.mxu0 0.0
          %625 = vmatpush1.xpose.msra.mxu0 0.0
          %626 = vmatprep.subr.mxu0 0.0
          %627 = vmatpush1.xpose.msra.mxu0 0.0
          %628 = vmatprep.subr.mxu0 0.0
          %629 = vmatpush1.xpose.msra.mxu0 0.0
          %630 = vmatprep.subr.mxu0 0.0
          %631 = vmatpush1.xpose.msra.mxu0 0.0
          %632 = vmatprep.subr.mxu0 0.0
          %633 = vmatpush1.xpose.msra.mxu0 0.0
          %634 = vmatprep.subr.mxu0 0.0
          %635 = vmatpush1.xpose.msra.mxu0 0.0
          %636 = vmatprep.subr.mxu0 0.0
          %637 = vmatpush1.xpose.msra.mxu0 0.0
          %638 = vmatprep.subr.mxu0 0.0
          %639 = vmatpush1.xpose.msra.mxu0 0.0
          %640 = vmatprep.subr.mxu0 0.0
          %641 = vmatpush1.xpose.msra.mxu0 0.0
          %642 = vmatprep.subr.mxu0 0.0
          %643 = vmatpush1.xpose.msra.mxu0 0.0
          %644 = vmatprep.mubr.f32.mxu0 0.0
          %645 = vmatmul.mubr.f32.gmra.mrb[0].mxu0 %v575
          %v646 = vpop.f32.mrb[0].mxu0
          %v647 = vadd.f32 0.0, %v646
          %v648 = vpop.f32.mrb[0].mxu0
          %649 = vdwg.mxu0
          %v650 = vstv %s176
          %v651 = vmul.f32 %v647, %v650
          %v653 = vsel %vm573, %v179, 0
          %655 = vmatprep.subr.mxu0 0.0
          %656 = vmatpush1.xpose.msra.mxu0 %v653
          %657 = vmatprep.subr.mxu0 0.0
          %658 = vmatpush1.xpose.msra.mxu0 0.0
          %659 = vmatprep.subr.mxu0 0.0
          %660 = vmatpush1.xpose.msra.mxu0 0.0
          %661 = vmatprep.subr.mxu0 0.0
          %662 = vmatpush1.xpose.msra.mxu0 0.0
          %663 = vmatprep.subr.mxu0 0.0
          %664 = vmatpush1.xpose.msra.mxu0 0.0
          %665 = vmatprep.subr.mxu0 0.0
          %666 = vmatpush1.xpose.msra.mxu0 0.0
          %667 = vmatprep.subr.mxu0 0.0
          %668 = vmatpush1.xpose.msra.mxu0 0.0
          %669 = vmatprep.subr.mxu0 0.0
          %670 = vmatpush1.xpose.msra.mxu0 0.0
          %671 = vmatprep.subr.mxu0 0.0
          %672 = vmatpush1.xpose.msra.mxu0 0.0
          %673 = vmatprep.subr.mxu0 0.0
          %674 = vmatpush1.xpose.msra.mxu0 0.0
          %675 = vmatprep.subr.mxu0 0.0
          %676 = vmatpush1.xpose.msra.mxu0 0.0
          %677 = vmatprep.subr.mxu0 0.0
          %678 = vmatpush1.xpose.msra.mxu0 0.0
          %679 = vmatprep.subr.mxu0 0.0
          %680 = vmatpush1.xpose.msra.mxu0 0.0
          %681 = vmatprep.subr.mxu0 0.0
          %682 = vmatpush1.xpose.msra.mxu0 0.0
          %683 = vmatprep.subr.mxu0 0.0
          %684 = vmatpush1.xpose.msra.mxu0 0.0
          %685 = vmatprep.subr.mxu0 0.0
          %686 = vmatpush1.xpose.msra.mxu0 0.0
          %687 = vmatprep.subr.mxu0 0.0
          %688 = vmatpush1.xpose.msra.mxu0 0.0
          %689 = vmatprep.subr.mxu0 0.0
          %690 = vmatpush1.xpose.msra.mxu0 0.0
          %691 = vmatprep.subr.mxu0 0.0
          %692 = vmatpush1.xpose.msra.mxu0 0.0
          %693 = vmatprep.subr.mxu0 0.0
          %694 = vmatpush1.xpose.msra.mxu0 0.0
          %695 = vmatprep.subr.mxu0 0.0
          %696 = vmatpush1.xpose.msra.mxu0 0.0
          %697 = vmatprep.subr.mxu0 0.0
          %698 = vmatpush1.xpose.msra.mxu0 0.0
          %699 = vmatprep.subr.mxu0 0.0
          %700 = vmatpush1.xpose.msra.mxu0 0.0
          %701 = vmatprep.subr.mxu0 0.0
          %702 = vmatpush1.xpose.msra.mxu0 0.0
          %703 = vmatprep.subr.mxu0 0.0
          %704 = vmatpush1.xpose.msra.mxu0 0.0
          %705 = vmatprep.subr.mxu0 0.0
          %706 = vmatpush1.xpose.msra.mxu0 0.0
          %707 = vmatprep.subr.mxu0 0.0
          %708 = vmatpush1.xpose.msra.mxu0 0.0
          %709 = vmatprep.subr.mxu0 0.0
          %710 = vmatpush1.xpose.msra.mxu0 0.0
          %711 = vmatprep.subr.mxu0 0.0
          %712 = vmatpush1.xpose.msra.mxu0 0.0
          %713 = vmatprep.subr.mxu0 0.0
          %714 = vmatpush1.xpose.msra.mxu0 0.0
          %715 = vmatprep.subr.mxu0 0.0
          %716 = vmatpush1.xpose.msra.mxu0 0.0
          %717 = vmatprep.subr.mxu0 0.0
          %718 = vmatpush1.xpose.msra.mxu0 0.0
          %719 = vmatprep.mubr.f32.mxu0 0.0
          %720 = vmatmul.mubr.f32.gmra.mrb[0].mxu0 %v575
          %v721 = vpop.f32.mrb[0].mxu0
          %v722 = vadd.f32 0.0, %v721
          %v723 = vpop.f32.mrb[0].mxu0
          %724 = vdwg.mxu0
          %v726 = vsel %vm573, %v181, 0
          %728 = vmatprep.subr.mxu0 0.0
          %729 = vmatpush1.xpose.msra.mxu0 %v578
          %730 = vmatprep.subr.mxu0 0.0
          %731 = vmatpush1.xpose.msra.mxu0 0.0
          %732 = vmatprep.subr.mxu0 0.0
          %733 = vmatpush1.xpose.msra.mxu0 0.0
          %734 = vmatprep.subr.mxu0 0.0
          %735 = vmatpush1.xpose.msra.mxu0 0.0
          %736 = vmatprep.subr.mxu0 0.0
          %737 = vmatpush1.xpose.msra.mxu0 0.0
          %738 = vmatprep.subr.mxu0 0.0
          %739 = vmatpush1.xpose.msra.mxu0 0.0
          %740 = vmatprep.subr.mxu0 0.0
          %741 = vmatpush1.xpose.msra.mxu0 0.0
          %742 = vmatprep.subr.mxu0 0.0
          %743 = vmatpush1.xpose.msra.mxu0 0.0
          %744 = vmatprep.subr.mxu0 0.0
          %745 = vmatpush1.xpose.msra.mxu0 0.0
          %746 = vmatprep.subr.mxu0 0.0
          %747 = vmatpush1.xpose.msra.mxu0 0.0
          %748 = vmatprep.subr.mxu0 0.0
          %749 = vmatpush1.xpose.msra.mxu0 0.0
          %750 = vmatprep.subr.mxu0 0.0
          %751 = vmatpush1.xpose.msra.mxu0 0.0
          %752 = vmatprep.subr.mxu0 0.0
          %753 = vmatpush1.xpose.msra.mxu0 0.0
          %754 = vmatprep.subr.mxu0 0.0
          %755 = vmatpush1.xpose.msra.mxu0 0.0
          %756 = vmatprep.subr.mxu0 0.0
          %757 = vmatpush1.xpose.msra.mxu0 0.0
          %758 = vmatprep.subr.mxu0 0.0
          %759 = vmatpush1.xpose.msra.mxu0 0.0
          %760 = vmatprep.subr.mxu0 0.0
          %761 = vmatpush1.xpose.msra.mxu0 0.0
          %762 = vmatprep.subr.mxu0 0.0
          %763 = vmatpush1.xpose.msra.mxu0 0.0
          %764 = vmatprep.subr.mxu0 0.0
          %765 = vmatpush1.xpose.msra.mxu0 0.0
          %766 = vmatprep.subr.mxu0 0.0
          %767 = vmatpush1.xpose.msra.mxu0 0.0
          %768 = vmatprep.subr.mxu0 0.0
          %769 = vmatpush1.xpose.msra.mxu0 0.0
          %770 = vmatprep.subr.mxu0 0.0
          %771 = vmatpush1.xpose.msra.mxu0 0.0
          %772 = vmatprep.subr.mxu0 0.0
          %773 = vmatpush1.xpose.msra.mxu0 0.0
          %774 = vmatprep.subr.mxu0 0.0
          %775 = vmatpush1.xpose.msra.mxu0 0.0
          %776 = vmatprep.subr.mxu0 0.0
          %777 = vmatpush1.xpose.msra.mxu0 0.0
          %778 = vmatprep.subr.mxu0 0.0
          %779 = vmatpush1.xpose.msra.mxu0 0.0
          %780 = vmatprep.subr.mxu0 0.0
          %781 = vmatpush1.xpose.msra.mxu0 0.0
          %782 = vmatprep.subr.mxu0 0.0
          %783 = vmatpush1.xpose.msra.mxu0 0.0
          %784 = vmatprep.subr.mxu0 0.0
          %785 = vmatpush1.xpose.msra.mxu0 0.0
          %786 = vmatprep.subr.mxu0 0.0
          %787 = vmatpush1.xpose.msra.mxu0 0.0
          %788 = vmatprep.subr.mxu0 0.0
          %789 = vmatpush1.xpose.msra.mxu0 0.0
          %790 = vmatprep.subr.mxu0 0.0
          %791 = vmatpush1.xpose.msra.mxu0 0.0
          %792 = vmatprep.mubr.f32.mxu0 0.0
          %793 = vmatmul.mubr.f32.gmra.mrb[0].mxu0 %v726
          %v794 = vpop.f32.mrb[0].mxu0
          %v795 = vadd.f32 %v722, %v794
          %v796 = vpop.f32.mrb[0].mxu0
          %797 = vdwg.mxu0
          %s798 = smul.f32 %s176, 0.5
          %v799 = vstv %s798
          %v800 = vmul.f32 %v795, %v799
          %s801 = scalar_lea.vmem [#allocation7], %s177
          %v802 = vld [vmem:[%s801] sm:$0xff]
          %804 = vset.pattern.permute.xlu0 0
          %805 = vperm.xlu0 %804, %v802
          %v806 = vpop.permute.xlu0 %805
          %v808 = vsub.f32 %v800, %v806
          %p809 = scmp.eq.s32.totalorder %s23, 0
          // Predicated region
          $region57: #{tpu_custom_call.1} parent=55 // pred_check
            %p810 = pneg %p809
          $region58: #{tpu_custom_call.1} parent=55 // pred_check_branch
            %812 = sbr.rel (%p810) target = $region60
          $region59: #{tpu_custom_call.1} parent=55 // pred_region
            %vm813 = vcmask 57344
            %814 = vst.msk [vmem:[#allocation8] sm:$0x1] %vm813, -inf
            %815 = vst.msk [vmem:[#allocation9] sm:$0x1] %vm813, 0.0
          $region60: #{tpu_custom_call.1} parent=55 // pred_fallthru
            _
          %vm816 = vcmask 64512
          %v817 = vsel %vm816, %v808, -inf
          %v818 = vrot.slane %v817, 4
          %v819 = vmax.f32 %v817, %v818
          %v820 = vrot.slane %v819, 2
          %v821 = vmax.f32 %v819, %v820
          %v822 = vrot.slane %v821, 1
          %v823 = vmax.f32 %v821, %v822
          %v824 = vlaneseq
          %v825 = vshrl.u32 %v824, 7
          %vm826 = vcmp.eq.f32.partialorder %v808, %v823
          %v827 = vsel %vm826, %v825, 8
          %v828 = vsel %vm816, %v827, 2147483647
          %v829 = vrot.slane %v828, 4
          %vm830 = vcmp.lt.s32.totalorder %v828, %v829
          %v831 = vsel %vm830, %v828, %v829
          %v832 = vrot.slane %v831, 2
          %vm833 = vcmp.lt.s32.totalorder %v831, %v832
          %v834 = vsel %vm833, %v831, %v832
          %v835 = vrot.slane %v834, 1
          %vm836 = vcmp.lt.s32.totalorder %v834, %v835
          %v837 = vsel %vm836, %v834, %v835
          %vm838 = vcmp.eq.s32.totalorder %v825, %v837
          %v839 = vsel %vm838, %v651, 0.0
          %v840 = vsel %vm816, %v839, 0.0
          %v841 = vrot.slane %v840, 4
          %v842 = vadd.f32 %v840, %v841
          %v843 = vrot.slane %v842, 2
          %v844 = vadd.f32 %v842, %v843
          %v845 = vrot.slane %v844, 1
          %v846 = vadd.f32 %v844, %v845
          %v847 = vld [vmem:[#allocation8] sm:$0x1]
          %vm848 = vcmp.gt.f32.partialorder %v823, %v847
          %v849 = vld [vmem:[#allocation9] sm:$0x1]
          %v850 = vsel %vm848, %v846, %v849
          %vm851 = vcmask 57344
          %852 = vst.msk [vmem:[#allocation9] sm:$0x1] %vm851, %v850
          %v853 = vld [vmem:[#allocation8] sm:$0x1]
          %v854 = vmax.f32 %v853, %v823
          %855 = vst.msk [vmem:[#allocation8] sm:$0x1] %vm851, %v854
          // Predicated region
          $region61: #{tpu_custom_call.1} parent=55 // pred_check
            %p856 = pneg %p809
          $region62: #{tpu_custom_call.1} parent=55 // pred_check_branch
            %858 = sbr.rel (%p856) target = $region64
          $region63: #{tpu_custom_call.1} parent=55 // pred_region
            %s859 = sld [smem:[#allocation10 + $0x1]]
            %v860 = vld [vmem:[#allocation9] sm:$0x1]
            %v861 = vsel %vm851, %v860, 0.0
            %862 = vadd.xlane.f32.xlu0 %v861
            %v863 = vpop.xlane.xlu0 %862
            %v864 = vrot.slane %v863, 4
            %v865 = vadd.f32 %v863, %v864
            %v866 = vrot.slane %v865, 2
            %v867 = vadd.f32 %v865, %v866
            %v868 = vrot.slane %v867, 1
            %v869 = vadd.f32 %v867, %v868
            %s870 = vtos %v869
            %s871 = ssub.f32 %s859, %s870
            %s872 = sld [smem:[#allocation10]]
            %s873 = sadd.f32 %s872, %s871
            %v874 = vrcp.pop 16.0
            %s875 = vtos %v874
            %s876 = smul.f32 %s873, %s875
            %s877 = scalar_lea.smem [#allocation17], 0
            %878 = sst [smem:[%s877]] %s876
          $region64: #{tpu_custom_call.1} parent=55 // pred_fallthru
            _
        $region56: #{tpu_custom_call.1} parent=31 // pred_fallthru
          _
        // Predicated region
        $region65: #{tpu_custom_call.1} parent=31 // pred_check
          %p879 = pneg %p106
        $region66: #{tpu_custom_call.1} parent=31 // pred_check_branch
          %881 = sbr.rel (%p879) target = $region68
        $region67: #{tpu_custom_call.1} parent=31 // pred_region
          %s883 = ssub.s32 16, 16
          %884 = vsyncadd [#allocation14], %s883
          %887 = dma.smem_to_hbm [#allocation17], 16, %s3, [#allocation14]
        $region68: #{tpu_custom_call.1} parent=31 // pred_fallthru
          _
        // Predicated region
        $region69: #{tpu_custom_call.1} parent=31 // pred_check
          %p888 = pneg %p106
        $region70: #{tpu_custom_call.1} parent=31 // pred_check_branch
          %890 = sbr.rel (%p888) target = $region72
        $region71: #{tpu_custom_call.1} parent=31 // pred_region
          %891 = dma.done [#allocation14], 16
        $region72: #{tpu_custom_call.1} parent=31 // pred_fallthru
          _
        %892 = sfence
      $region32: #{tpu_custom_call.1} parent=5 // pred_fallthru
        _
      %p893 = scmp.le.s32.totalorder 2, %s13
      // Predicated region
      $region73: #{tpu_custom_call.1} parent=5 // pred_check
        %p894 = pneg %p893
      $region74: #{tpu_custom_call.1} parent=5 // pred_check_branch
        %896 = sbr.rel (%p894) target = $region76
      $region75: #{tpu_custom_call.1} parent=5 // pred_region
        %s897 = ssub.s32 %s13, 2
      $region76: #{tpu_custom_call.1} parent=5 // pred_fallthru
        _
    $region6: #{tpu_custom_call.1} parent=1 // loop_footer
      %s17 = sadd.s32 1, %s13
    $region7: #{tpu_custom_call.1} parent=1 // loop_footer_branch
      %12 = sbr.rel target = $region3
    $region8: #{tpu_custom_call.1} parent=1 // loop_exit
      _
    %898 = vsyncpa [#allocation13], 1
    %s899 = scalar_lea.sflag [#allocation13], 1
    %900 = vsyncpa %s899, 1
    %901 = vsyncpa [#allocation16], 1
    %902 = vsyncpa [#allocation14], 1
    %s903 = scalar_lea.sflag [#allocation14], 1
    %904 = vsyncpa %s903, 1

</llo_original>
